<compile_context>
chip_gen: v5e
topology: v5e:2x2
jax: 0.10.0
libtpu: 0.0.40
codegen_flags: <defaults>
</compile_context>

<pallas_src>
import functools
import math

import jax
import jax.numpy as jnp
from jax.experimental import pallas as pl
from jax.experimental.pallas import tpu as pltpu


# ----------------------------------------------------------------------------
# small helpers
# ----------------------------------------------------------------------------
def _round_up(x, m):
    return ((x + m - 1) // m) * m


def _cdiv(a, b):
    return (a + b - 1) // b


def _vmem_capacity_bytes():
    """Physical VMEM of the local TPU (64 MiB conservative fallback, v7x-sized)."""
    try:
        info = pltpu.get_tpu_info()
        cap = getattr(info, "vmem_capacity_bytes", None)
        if cap:
            return int(cap)
    except Exception:
        pass
    return 64 * 1024 * 1024


def yarn_get_mscale(scale=1.0, mscale=1.0):
    if scale <= 1:
        return 1.0
    return 0.1 * mscale * math.log(scale) + 1.0


# ----------------------------------------------------------------------------
# RMSNorm kernel (DeepseekV3RMSNorm)
# ----------------------------------------------------------------------------
def _rmsnorm_kernel(x_ref, w_ref, o_ref, *, eps):
    # x_ref: (row_tile, H) tile, w_ref: (1, H) whole weight resident in VMEM.
    x = x_ref[...].astype(jnp.float32)
    var = jnp.mean(x * x, axis=-1, keepdims=True)
    xhat = (x * jax.lax.rsqrt(var + eps)).astype(x_ref.dtype)   # cast back first
    o_ref[...] = (w_ref[...] * xhat).astype(o_ref.dtype)        # then scale (torch order)


def rmsnorm_pallas(x, weight, eps=1e-6, row_tile=None):
    """x: (..., H), weight: (H,). Matches DeepseekV3RMSNorm.forward semantics."""
    orig_shape = x.shape
    H = orig_shape[-1]
    x2d = x.reshape(-1, H)
    R = x2d.shape[0]

    vmem_cap = _vmem_capacity_bytes()
    if row_tile is None:
        bytes_per_row = H * x2d.dtype.itemsize
        # per-tile budget ~ VMEM/8  =>  double-buffered (in + out) ~ VMEM/2
        row_tile = (vmem_cap // 8) // max(bytes_per_row, 1)
        row_tile = max(16, (row_tile // 16) * 16)   # multiple of 16 (covers f32 & bf16)
    # keep a handful of grid steps so both v7x TensorCores stay busy
    row_tile = min(row_tile, max(16, _round_up(_cdiv(R, 8), 16)))
    row_tile = min(row_tile, _round_up(R, 16))

    Rp = _round_up(R, row_tile)
    if Rp != R:
        x2d = jnp.pad(x2d, ((0, Rp - R), (0, 0)))

    w2d = weight.reshape(1, H)

    out = pl.pallas_call(
        functools.partial(_rmsnorm_kernel, eps=float(eps)),
        out_shape=jax.ShapeDtypeStruct((Rp, H), x2d.dtype),
        grid=(Rp // row_tile,),
        in_specs=[
            pl.BlockSpec((row_tile, H), lambda i: (i, 0)),
            # weight: whole array resident in VMEM, no per-step DMA / double buffer
            pl.BlockSpec(memory_space=pltpu.MemorySpace.VMEM),
        ],
        out_specs=pl.BlockSpec((row_tile, H), lambda i: (i, 0)),
        compiler_params=pltpu.CompilerParams(
            dimension_semantics=("parallel",),
            vmem_limit_bytes=int(min(vmem_cap * 3 // 4, 128 * 1024 * 1024)),
        ),
    )(x2d, w2d)

    if Rp != R:
        out = out[:R]
    return out.reshape(orig_shape)


# ----------------------------------------------------------------------------
# Tiled matmul kernel (all nn.Linear projections, bias=False)
# ----------------------------------------------------------------------------
def _matmul_kernel(a_ref, b_ref, o_ref, acc_ref):
    @pl.when(pl.program_id(2) == 0)
    def _():
        acc_ref[...] = jnp.zeros_like(acc_ref)

    acc_ref[...] += jnp.dot(a_ref[...], b_ref[...],
                            preferred_element_type=jnp.float32)

    @pl.when(pl.program_id(2) == pl.num_programs(2) - 1)
    def _():
        o_ref[...] = acc_ref[...].astype(o_ref.dtype)


def matmul_pallas(a, b, out_dtype=None, tm=256, tn=256, tk=512):
    """a: (M, K), b: (K, N) -> (M, N). Pads to (8,128)-aligned tiles."""
    M, K = a.shape
    K2, N = b.shape
    assert K == K2
    out_dtype = out_dtype or a.dtype

    tm = min(tm, _round_up(M, 8))
    tn = min(tn, _round_up(N, 128))
    tk = min(tk, _round_up(K, 128))
    Mp, Kp, Np = _round_up(M, tm), _round_up(K, tk), _round_up(N, tn)

    a_p = jnp.pad(a, ((0, Mp - M), (0, Kp - K))) if (Mp, Kp) != (M, K) else a
    b_p = jnp.pad(b, ((0, Kp - K), (0, Np - N))) if (Kp, Np) != (K, N) else b

    out = pl.pallas_call(
        _matmul_kernel,
        out_shape=jax.ShapeDtypeStruct((Mp, Np), out_dtype),
        grid=(Mp // tm, Np // tn, Kp // tk),
        in_specs=[
            pl.BlockSpec((tm, tk), lambda i, j, k: (i, k)),
            pl.BlockSpec((tk, tn), lambda i, j, k: (k, j)),
        ],
        out_specs=pl.BlockSpec((tm, tn), lambda i, j, k: (i, j)),
        scratch_shapes=[pltpu.VMEM((tm, tn), jnp.float32)],
        compiler_params=pltpu.CompilerParams(
            dimension_semantics=("parallel", "parallel", "arbitrary"),
        ),
    )(a_p, b_p)
    return out[:M, :N]


# ----------------------------------------------------------------------------
# Attention core kernel (eager_attention_forward semantics, dropout=0)
# ----------------------------------------------------------------------------
def _attention_kernel(q_ref, k_ref, v_ref, mask_ref, o_ref, *, scaling):
    # q_ref: (tq, Dqk), k_ref: (S, Dqk), v_ref: (S, Dv), mask_ref: (tq, S)
    q = q_ref[...].astype(jnp.float32)
    k = k_ref[...].astype(jnp.float32)
    s = jnp.einsum("qd,kd->qk", q, k, preferred_element_type=jnp.float32)
    s = s * scaling + mask_ref[...].astype(jnp.float32)
    m = jnp.max(s, axis=-1, keepdims=True)
    e = jnp.exp(s - m)
    p = e / jnp.sum(e, axis=-1, keepdims=True)          # softmax in float32
    p = p.astype(v_ref.dtype)                           # .to(query.dtype)
    o_ref[...] = jnp.dot(p, v_ref[...],
                         preferred_element_type=jnp.float32).astype(o_ref.dtype)


def mla_attention_pallas(query, key, value, attention_mask, scaling, q_tile=256):
    """query/key: (B, H, S, Dqk), value: (B, H, S, Dv), mask: (B, 1, S, S)."""
    B, H, S, Dqk = query.shape
    Dv = value.shape[-1]

    tq = min(q_tile, _round_up(S, 8))
    Sp = _round_up(S, tq)
    if Sp != S:
        query = jnp.pad(query, ((0, 0), (0, 0), (0, Sp - S), (0, 0)))
        attention_mask = jnp.pad(attention_mask,
                                 ((0, 0), (0, 0), (0, Sp - S), (0, 0)))

    # TODO(synk): for very long sequences, tile K/V with an online-softmax
    # (flash-style) accumulator instead of keeping full per-head K/V in VMEM.
    out = pl.pallas_call(
        functools.partial(_attention_kernel, scaling=float(scaling)),
        out_shape=jax.ShapeDtypeStruct((B, H, Sp, Dv), query.dtype),
        grid=(B, H, Sp // tq),
        in_specs=[
            pl.BlockSpec((None, None, tq, Dqk), lambda b, h, i: (b, h, i, 0)),
            pl.BlockSpec((None, None, S, Dqk), lambda b, h, i: (b, h, 0, 0)),
            pl.BlockSpec((None, None, S, Dv), lambda b, h, i: (b, h, 0, 0)),
            pl.BlockSpec((None, None, tq, S), lambda b, h, i: (b, 0, i, 0)),
        ],
        out_specs=pl.BlockSpec((None, None, tq, Dv), lambda b, h, i: (b, h, i, 0)),
        compiler_params=pltpu.CompilerParams(
            dimension_semantics=("parallel", "parallel", "arbitrary"),
        ),
    )(query, key, value, attention_mask)
    return out[:, :, :S, :]


# ----------------------------------------------------------------------------
# RoPE helpers (plain JAX glue, matches the PyTorch reference functions)
# ----------------------------------------------------------------------------
def rotate_half(x):
    half = x.shape[-1] // 2
    return jnp.concatenate([-x[..., half:], x[..., :half]], axis=-1)


def apply_rotary_pos_emb(q, k, cos, sin, unsqueeze_dim=1):
    cos = jnp.expand_dims(cos, unsqueeze_dim)
    sin = jnp.expand_dims(sin, unsqueeze_dim)
    return q * cos + rotate_half(q) * sin, k * cos + rotate_half(k) * sin


def apply_rotary_pos_emb_interleave(q, k, cos, sin, unsqueeze_dim=1):
    cos = jnp.expand_dims(cos, unsqueeze_dim)
    sin = jnp.expand_dims(sin, unsqueeze_dim)
    b, h, s, d = q.shape
    q = q.reshape(b, h, s, d // 2, 2).transpose(0, 1, 2, 4, 3).reshape(b, h, s, d)
    b, h, s, d = k.shape
    k = k.reshape(b, h, s, d // 2, 2).transpose(0, 1, 2, 4, 3).reshape(b, h, s, d)
    return q * cos + rotate_half(q) * sin, k * cos + rotate_half(k) * sin


# ----------------------------------------------------------------------------
# Full DeepseekV3Attention forward (Pallas kernels + JAX glue)
# ----------------------------------------------------------------------------
def deepseek_v3_attention_pallas(params, cfg, hidden_states, position_embeddings,
                                 attention_mask=None):
    B, S, hidden = hidden_states.shape
    nH = cfg["num_attention_heads"]
    dn, dr, dv = cfg["qk_nope_head_dim"], cfg["qk_rope_head_dim"], cfg["v_head_dim"]
    dqk = dn + dr
    eps = cfg["rms_norm_eps"]

    x2d = hidden_states.reshape(B * S, hidden)

    # ---- query path ----
    if cfg["q_lora_rank"] is None:
        q = matmul_pallas(x2d, params["q_proj"])
    else:
        qa = matmul_pallas(x2d, params["q_a_proj"])
        qa = rmsnorm_pallas(qa, params["q_a_layernorm"], eps=eps)
        q = matmul_pallas(qa, params["q_b_proj"])
    q = q.reshape(B, S, nH, dqk).transpose(0, 2, 1, 3)          # (B, H, S, dqk)
    q_pass, q_rot = q[..., :dn], q[..., dn:]

    # ---- key/value latent path ----
    ckv = matmul_pallas(x2d, params["kv_a_proj_with_mqa"])       # (B*S, kv_lora + dr)
    k_lat = ckv[:, : cfg["kv_lora_rank"]]
    k_rot = ckv[:, cfg["kv_lora_rank"]:].reshape(B, 1, S, dr)
    k_lat = rmsnorm_pallas(k_lat, params["kv_a_layernorm"], eps=eps)
    kv = matmul_pallas(k_lat, params["kv_b_proj"])               # (B*S, H*(dn+dv))
    kv = kv.reshape(B, S, nH, dn + dv).transpose(0, 2, 1, 3)     # (B, H, S, dn+dv)
    k_pass, value = kv[..., :dn], kv[..., dn:]

    # ---- RoPE ----
    cos, sin = position_embeddings
    if cfg["rope_interleave"]:
        q_rot, k_rot = apply_rotary_pos_emb_interleave(q_rot, k_rot, cos, sin)
    else:
        q_rot, k_rot = apply_rotary_pos_emb(q_rot, k_rot, cos, sin)
    k_rot = jnp.broadcast_to(k_rot, (B, nH, S, dr))

    query = jnp.concatenate([q_pass, q_rot], axis=-1)
    key = jnp.concatenate([k_pass, k_rot], axis=-1)

    # ---- attention core (num_key_value_groups == 1 -> repeat_kv is a no-op) ----
    if attention_mask is None:
        attention_mask = jnp.zeros((B, 1, S, S), dtype=jnp.float32)
    attn_out = mla_attention_pallas(query, key, value,
                                    attention_mask[:, :, :, :S],
                                    scaling=cfg["scaling"])       # (B, H, S, dv)

    attn_out = attn_out.transpose(0, 2, 1, 3).reshape(B * S, nH * dv)
    out = matmul_pallas(attn_out, params["o_proj"]).reshape(B, S, hidden)

    # TODO(synk): attn_weights are not materialized (flash-style); KV-cache update
    # (past_key_value) and training-time dropout are not implemented.
    return out, None


# ----------------------------------------------------------------------------
# Pure-JAX reference (mirrors the PyTorch eager forward path)
# ----------------------------------------------------------------------------
def _rmsnorm_ref(x, w, eps):
    x32 = x.astype(jnp.float32)
    var = jnp.mean(x32 * x32, axis=-1, keepdims=True)
    return w * (x32 * jax.lax.rsqrt(var + eps)).astype(x.dtype)


def deepseek_v3_attention_ref(params, cfg, hidden_states, position_embeddings,
                              attention_mask):
    B, S, _ = hidden_states.shape
    nH = cfg["num_attention_heads"]
    dn, dr, dv = cfg["qk_nope_head_dim"], cfg["qk_rope_head_dim"], cfg["v_head_dim"]
    dqk = dn + dr
    eps = cfg["rms_norm_eps"]
    x = hidden_states

    if cfg["q_lora_rank"] is None:
        q = x @ params["q_proj"]
    else:
        qa = _rmsnorm_ref(x @ params["q_a_proj"], params["q_a_layernorm"], eps)
        q = qa @ params["q_b_proj"]
    q = q.reshape(B, S, nH, dqk).transpose(0, 2, 1, 3)
    q_pass, q_rot = q[..., :dn], q[..., dn:]

    ckv = x @ params["kv_a_proj_with_mqa"]
    k_lat, k_rot = ckv[..., : cfg["kv_lora_rank"]], ckv[..., cfg["kv_lora_rank"]:]
    kv = _rmsnorm_ref(k_lat, params["kv_a_layernorm"], eps) @ params["kv_b_proj"]
    kv = kv.reshape(B, S, nH, dn + dv).transpose(0, 2, 1, 3)
    k_pass, value = kv[..., :dn], kv[..., dn:]
    k_rot = k_rot.reshape(B, 1, S, dr)

    cos, sin = position_embeddings
    if cfg["rope_interleave"]:
        q_rot, k_rot = apply_rotary_pos_emb_interleave(q_rot, k_rot, cos, sin)
    else:
        q_rot, k_rot = apply_rotary_pos_emb(q_rot, k_rot, cos, sin)
    k_rot = jnp.broadcast_to(k_rot, (B, nH, S, dr))

    query = jnp.concatenate([q_pass, q_rot], axis=-1)
    key = jnp.concatenate([k_pass, k_rot], axis=-1)

    attn = jnp.einsum("bhqd,bhkd->bhqk", query, key) * cfg["scaling"]
    if attention_mask is not None:
        attn = attn + attention_mask[:, :, :, :S]
    attn = jax.nn.softmax(attn.astype(jnp.float32), axis=-1).astype(query.dtype)
    out = jnp.einsum("bhqk,bhkd->bhqd", attn, value)
    out = out.transpose(0, 2, 1, 3).reshape(B, S, nH * dv)
    return out @ params["o_proj"]


def make_rope_embeddings(seq_len, dim, base, batch, dtype=jnp.float32):
    inv_freq = 1.0 / (base ** (jnp.arange(0, dim, 2, dtype=jnp.float32) / dim))
    t = jnp.arange(seq_len, dtype=jnp.float32)
    freqs = jnp.outer(t, inv_freq)
    emb = jnp.concatenate([freqs, freqs], axis=-1)
    cos = jnp.broadcast_to(jnp.cos(emb)[None], (batch, seq_len, dim)).astype(dtype)
    sin = jnp.broadcast_to(jnp.sin(emb)[None], (batch, seq_len, dim)).astype(dtype)
    return cos, sin


# ----------------------------------------------------------------------------
# demo / correctness check
# ----------------------------------------------------------------------------
if __name__ == "__main__":
    # Small DeepseekV3-style config (MLA with q LoRA path).
    batch, seq = 2, 8
    hidden_size = 128
    num_heads = 4
    q_lora_rank = 64
    kv_lora_rank = 32
    qk_nope_head_dim = 32
    qk_rope_head_dim = 16
    v_head_dim = 32
    qk_head_dim = qk_nope_head_dim + qk_rope_head_dim
    rope_theta = 10000.0
    rope_scaling = None
    rms_norm_eps = 1e-6

    scaling = qk_head_dim ** (-0.5)
    if rope_scaling is not None:
        mscale_all_dim = rope_scaling.get("mscale_all_dim", 0)
        factor = rope_scaling["factor"]
        if mscale_all_dim:
            m = yarn_get_mscale(factor, mscale_all_dim)
            scaling = scaling * m * m

    cfg = dict(
        num_attention_heads=num_heads,
        q_lora_rank=q_lora_rank,
        kv_lora_rank=kv_lora_rank,
        qk_nope_head_dim=qk_nope_head_dim,
        qk_rope_head_dim=qk_rope_head_dim,
        v_head_dim=v_head_dim,
        rope_interleave=True,
        rms_norm_eps=rms_norm_eps,
        scaling=scaling,
    )

    key = jax.random.PRNGKey(0)
    ks = jax.random.split(key, 9)

    def linear_w(k, fan_in, fan_out):
        return jax.random.normal(k, (fan_in, fan_out), jnp.float32) / jnp.sqrt(float(fan_in))

    params = {
        "q_a_proj": linear_w(ks[0], hidden_size, q_lora_rank),
        "q_a_layernorm": 1.0 + 0.05 * jax.random.normal(ks[1], (q_lora_rank,), jnp.float32),
        "q_b_proj": linear_w(ks[2], q_lora_rank, num_heads * qk_head_dim),
        "kv_a_proj_with_mqa": linear_w(ks[3], hidden_size, kv_lora_rank + qk_rope_head_dim),
        "kv_a_layernorm": 1.0 + 0.05 * jax.random.normal(ks[4], (kv_lora_rank,), jnp.float32),
        "kv_b_proj": linear_w(ks[5], kv_lora_rank, num_heads * (qk_nope_head_dim + v_head_dim)),
        "o_proj": linear_w(ks[6], num_heads * v_head_dim, hidden_size),
    }

    hidden_states = jax.random.normal(ks[7], (batch, seq, hidden_size), jnp.float32)
    cos, sin = make_rope_embeddings(seq, qk_rope_head_dim, rope_theta, batch)

    neg = jnp.finfo(jnp.float32).min
    causal = jnp.tril(jnp.ones((seq, seq), dtype=bool))
    attention_mask = jnp.broadcast_to(
        jnp.where(causal, 0.0, neg), (batch, 1, seq, seq)).astype(jnp.float32)

    out, _ = deepseek_v3_attention_pallas(
        params, cfg, hidden_states, (cos, sin), attention_mask)
    out = jax.block_until_ready(out)

    ref = deepseek_v3_attention_ref(
        params, cfg, hidden_states, (cos, sin), attention_mask)

    assert out.shape == (batch, seq, hidden_size)
    assert out.dtype == hidden_states.dtype
    assert jnp.allclose(out, ref, atol=2e-4, rtol=2e-4), (
        f"mismatch vs reference, max abs err {jnp.max(jnp.abs(out - ref))}")

    print("KERNEL_OK")
</pallas_src>

<mosaic_0001>
module attributes {stable_mosaic.version = 11 : i64} {
  func.func @_matmul_kernel(%arg0: i32, %arg1: i32, %arg2: i32, %arg3: memref<16x128xf32, #tpu.memory_space<vmem>>, %arg4: memref<128x128xf32, #tpu.memory_space<vmem>>, %arg5: memref<16x128xf32, #tpu.memory_space<vmem>>, %arg6: memref<16x128xf32, #tpu.memory_space<vmem>>) attributes {dimension_semantics = [#tpu.dimension_semantics<parallel>, #tpu.dimension_semantics<parallel>, #tpu.dimension_semantics<arbitrary>], iteration_bounds = array<i64: 1, 1, 1>, scalar_prefetch = 0 : i64, scratch_operands = 1 : i64, tpu.core_type = #tpu.core_type<tc>, window_params = [{transform_indices = @transform_0, window_bounds = array<i64: 16, 128>}, {transform_indices = @transform_1, window_bounds = array<i64: 128, 128>}, {transform_indices = @transform_2, window_bounds = array<i64: 16, 128>}]} {
    %c0_i32 = arith.constant 0 : i32
    %0 = arith.cmpi eq, %arg2, %c0_i32 : i32
    %1 = arith.extui %0 : i1 to i32
    %c0_i32_0 = arith.constant 0 : i32
    %2 = arith.cmpi ne, %1, %c0_i32_0 : i32
    scf.if %2 {
      %cst_10 = arith.constant 0.000000e+00 : f32
      %12 = vector.broadcast %cst_10 : f32 to vector<16x128xf32>
      %c0_11 = arith.constant 0 : index
      %c0_12 = arith.constant 0 : index
      %13 = vector.load %arg6[%c0_11, %c0_12] : memref<16x128xf32, #tpu.memory_space<vmem>>, vector<16x128xf32>
      tpu.vector_store %arg6[%c0_11, %c0_12], %12 {strides = array<i32>} : memref<16x128xf32, #tpu.memory_space<vmem>>, vector<16x128xf32>,
    } else {
    }
    %c0 = arith.constant 0 : index
    %c0_1 = arith.constant 0 : index
    %3 = vector.load %arg6[%c0, %c0_1] : memref<16x128xf32, #tpu.memory_space<vmem>>, vector<16x128xf32>
    %c0_2 = arith.constant 0 : index
    %c0_3 = arith.constant 0 : index
    %4 = vector.load %arg3[%c0_2, %c0_3] : memref<16x128xf32, #tpu.memory_space<vmem>>, vector<16x128xf32>
    %c0_4 = arith.constant 0 : index
    %c0_5 = arith.constant 0 : index
    %5 = vector.load %arg4[%c0_4, %c0_5] : memref<128x128xf32, #tpu.memory_space<vmem>>, vector<128x128xf32>
    %cst = arith.constant dense<0.000000e+00> : vector<16x128xf32>
    %6 = tpu.matmul %4, %5, %cst {dimension_numbers = #tpu.dot_dimension_numbers<[1], [0], [0], [1], [0, 0, 1, 1], [], []>} : vector<16x128xf32>, vector<128x128xf32>, vector<16x128xf32> -> vector<16x128xf32>
    %7 = arith.addf %3, %6 : vector<16x128xf32>
    %c0_6 = arith.constant 0 : index
    %c0_7 = arith.constant 0 : index
    %8 = vector.load %arg6[%c0_6, %c0_7] : memref<16x128xf32, #tpu.memory_space<vmem>>, vector<16x128xf32>
    tpu.vector_store %arg6[%c0_6, %c0_7], %7 {strides = array<i32>} : memref<16x128xf32, #tpu.memory_space<vmem>>, vector<16x128xf32>,
    %c0_i32_8 = arith.constant 0 : i32
    %9 = arith.cmpi eq, %arg2, %c0_i32_8 : i32
    %10 = arith.extui %9 : i1 to i32
    %c0_i32_9 = arith.constant 0 : i32
    %11 = arith.cmpi ne, %10, %c0_i32_9 : i32
    scf.if %11 {
      %c0_10 = arith.constant 0 : index
      %c0_11 = arith.constant 0 : index
      %12 = vector.load %arg6[%c0_10, %c0_11] : memref<16x128xf32, #tpu.memory_space<vmem>>, vector<16x128xf32>
      %c0_12 = arith.constant 0 : index
      %c0_13 = arith.constant 0 : index
      %13 = vector.load %arg5[%c0_12, %c0_13] : memref<16x128xf32, #tpu.memory_space<vmem>>, vector<16x128xf32>
      tpu.vector_store %arg5[%c0_12, %c0_13], %12 {strides = array<i32>} : memref<16x128xf32, #tpu.memory_space<vmem>>, vector<16x128xf32>,
    } else {
    }
    return
  }
  func.func @transform_0(%arg0: i32, %arg1: i32, %arg2: i32) -> (i32, i32) {
    %c0_i32 = arith.constant 0 : i32
    return %arg0, %arg2 : i32, i32
  }
  func.func @transform_1(%arg0: i32, %arg1: i32, %arg2: i32) -> (i32, i32) {
    %c0_i32 = arith.constant 0 : i32
    return %arg2, %arg1 : i32, i32
  }
  func.func @transform_2(%arg0: i32, %arg1: i32, %arg2: i32) -> (i32, i32) {
    %c0_i32 = arith.constant 0 : i32
    return %arg0, %arg1 : i32, i32
  }
}

</mosaic_0001>

<llo_original>
// kernel: tpu_custom_call.1
$region0: #{tpu_custom_call.1}
  #allocation0 [shape = 'u32[]', space=smem, size = 0x4, offset = 0x4, fixed_abs, tag = 'smem constant byte address 0x4 - core index']
  #allocation1 [shape = 'u32[72,128]{1,0:T(1,128)}', space=vmem, size = 0x9000, scoped, tag = 'internal scratch']
  #allocation2 [shape = 'f32[16,128]{1,0:T(8,128)}', space=vmem, size = 0x2000, scoped, tag = 'scratch operand']
  %s0 = inlined_call_operand.hbm [shape: f32[16,128], index: 0, kind: input, shape index: {}]
  %s1 = inlined_call_operand.hbm [shape: f32[128,128], index: 1, kind: input, shape index: {}]
  %s2 = inlined_call_operand.hbm [shape: f32[16,128], index: 2, kind: output, shape index: {}]
  %s3 = sld [smem:[#allocation0]]
  $region34: #{tpu_custom_call.1} parent=0
    _
  %s5 = ssub.s32 1, %s3
  %s6 = scalar_select 0, %s5, %s3
  $region1: #{tpu_custom_call.1} parent=0
    #allocation3 [shape = 'u8[8192]{0}', space=vmem, size = 0x2000, scoped, tag = 'input window, operand 0, single buffered']
    #allocation4 [shape = 's32[1]{0}', space=sflag, size = 0x4, scoped, tag = 'scoped memory for tpu_custom_call.1']
    #allocation5 [shape = 's32[1]{0}', space=sflag, size = 0x4, scoped, tag = 'scoped memory for tpu_custom_call.1']
    #allocation6 [shape = 'u8[65536]{0}', space=vmem, size = 0x10000, scoped, tag = 'input window, operand 1, single buffered']
    #allocation7 [shape = 's32[1]{0}', space=sflag, size = 0x4, scoped, tag = 'scoped memory for tpu_custom_call.1']
    #allocation8 [shape = 'u8[8192]{0}', space=vmem, size = 0x2000, scoped, tag = 'output window, operand 0, single buffered']
    %7 = vsyncpa [#allocation4], 0
    %8 = vsyncpa [#allocation7], 0
    %9 = vsyncpa [#allocation5], 0
    // Predicated region
    $region2: #{tpu_custom_call.1} parent=1 // pred_check
      _
    $region3: #{tpu_custom_call.1} parent=1 // pred_check_branch
      %11 = sbr.rel (0) target = $region5
    $region4: #{tpu_custom_call.1} parent=1 // pred_region
      %13 = vsyncadd [#allocation4], 0
      %s14 = sshll.u32 %s0, 4
      %s15 = int_to_ptr.hbm [resolvable:$true] %s14
      %s16 = sshll.u32 [#allocation3], 4
      %s17 = int_to_ptr.vmem [resolvable:$true] %s16
      %22 = dma.hbm_to_vmem [thread:$0]  %s15, 256, %s17, [#allocation4], 128, 128, 8
    $region5: #{tpu_custom_call.1} parent=1 // pred_fallthru
      _
    // Predicated region
    $region6: #{tpu_custom_call.1} parent=1 // pred_check
      _
    $region7: #{tpu_custom_call.1} parent=1 // pred_check_branch
      %24 = sbr.rel (0) target = $region9
    $region8: #{tpu_custom_call.1} parent=1 // pred_region
      %26 = vsyncadd [#allocation7], 0
      %s27 = sshll.u32 %s1, 4
      %s28 = int_to_ptr.hbm [resolvable:$true] %s27
      %s29 = sshll.u32 [#allocation6], 4
      %s30 = int_to_ptr.vmem [resolvable:$true] %s29
      %35 = dma.hbm_to_vmem [thread:$0]  %s28, 2048, %s30, [#allocation7], 128, 128, 8
    $region9: #{tpu_custom_call.1} parent=1 // pred_fallthru
      _
    // Predicated region
    $region10: #{tpu_custom_call.1} parent=1 // pred_check
      _
    $region11: #{tpu_custom_call.1} parent=1 // pred_check_branch
      %37 = sbr.rel (0) target = $region13
    $region12: #{tpu_custom_call.1} parent=1 // pred_region
      %39 = dma.done [#allocation4], 256
    $region13: #{tpu_custom_call.1} parent=1 // pred_fallthru
      _
    // Predicated region
    $region14: #{tpu_custom_call.1} parent=1 // pred_check
      _
    $region15: #{tpu_custom_call.1} parent=1 // pred_check_branch
      %41 = sbr.rel (0) target = $region17
    $region16: #{tpu_custom_call.1} parent=1 // pred_region
      %43 = dma.done [#allocation7], 2048
    $region17: #{tpu_custom_call.1} parent=1 // pred_fallthru
      _
    %p44 = scmp.eq.s32.totalorder 0, 0
    // Predicated region
    $region18: #{tpu_custom_call.1} parent=1 // pred_check
      %p45 = pneg %p44
    $region19: #{tpu_custom_call.1} parent=1 // pred_check_branch
      %47 = sbr.rel (%p45) target = $region21
    $region20: #{tpu_custom_call.1} parent=1 // pred_region
      %48 = vst [vmem:[#allocation2] sm:$0xff] 0.0
      %49 = vst [vmem:[#allocation2 + $0x8] sm:$0xff] 0.0
    $region21: #{tpu_custom_call.1} parent=1 // pred_fallthru
      _
    %v50 = vld [vmem:[#allocation2] sm:$0xff]
    %v51 = vld [vmem:[#allocation2 + $0x8] sm:$0xff]
    %v52 = vld [vmem:[#allocation3] sm:$0xff]
    %v53 = vld [vmem:[#allocation3 + $0x8] sm:$0xff]
    %v54 = vld [vmem:[#allocation6] sm:$0xff]
    %v55 = vld [vmem:[#allocation6 + $0x8] sm:$0xff]
    %v56 = vld [vmem:[#allocation6 + $0x10] sm:$0xff]
    %v57 = vld [vmem:[#allocation6 + $0x18] sm:$0xff]
    %v58 = vld [vmem:[#allocation6 + $0x20] sm:$0xff]
    %v59 = vld [vmem:[#allocation6 + $0x28] sm:$0xff]
    %v60 = vld [vmem:[#allocation6 + $0x30] sm:$0xff]
    %v61 = vld [vmem:[#allocation6 + $0x38] sm:$0xff]
    %v62 = vld [vmem:[#allocation6 + $0x40] sm:$0xff]
    %v63 = vld [vmem:[#allocation6 + $0x48] sm:$0xff]
    %v64 = vld [vmem:[#allocation6 + $0x50] sm:$0xff]
    %v65 = vld [vmem:[#allocation6 + $0x58] sm:$0xff]
    %v66 = vld [vmem:[#allocation6 + $0x60] sm:$0xff]
    %v67 = vld [vmem:[#allocation6 + $0x68] sm:$0xff]
    %v68 = vld [vmem:[#allocation6 + $0x70] sm:$0xff]
    %v69 = vld [vmem:[#allocation6 + $0x78] sm:$0xff]
    %70 = vmatpush.msra.mxu0 %v69
    %71 = vmatpush.msra.mxu0 %v68
    %72 = vmatpush.msra.mxu0 %v67
    %73 = vmatpush.msra.mxu0 %v66
    %74 = vmatpush.msra.mxu0 %v65
    %75 = vmatpush.msra.mxu0 %v64
    %76 = vmatpush.msra.mxu0 %v63
    %77 = vmatpush.msra.mxu0 %v62
    %78 = vmatpush.msra.mxu0 %v61
    %79 = vmatpush.msra.mxu0 %v60
    %80 = vmatpush.msra.mxu0 %v59
    %81 = vmatpush.msra.mxu0 %v58
    %82 = vmatpush.msra.mxu0 %v57
    %83 = vmatpush.msra.mxu0 %v56
    %84 = vmatpush.msra.mxu0 %v55
    %85 = vmatpush.msra.mxu0 %v54
    %86 = vmatmul.f32.gmra.mxu0 %v52
    %v87 = vpop.f32.mrf.mxu0
    %v88 = vadd.f32 0.0, %v87
    %89 = vmatmul.f32.gmra.mxu0 %v53
    %v90 = vpop.f32.mrf.mxu0
    %v91 = vadd.f32 0.0, %v90
    %92 = vdwg.mxu0
    %v93 = vadd.f32 %v50, %v88
    %v94 = vadd.f32 %v51, %v91
    %95 = vst [vmem:[#allocation2] sm:$0xff] %v93
    %96 = vst [vmem:[#allocation2 + $0x8] sm:$0xff] %v94
    // Predicated region
    $region22: #{tpu_custom_call.1} parent=1 // pred_check
      %p97 = pneg %p44
    $region23: #{tpu_custom_call.1} parent=1 // pred_check_branch
      %99 = sbr.rel (%p97) target = $region25
    $region24: #{tpu_custom_call.1} parent=1 // pred_region
      %v100 = vld [vmem:[#allocation2] sm:$0xff]
      %v101 = vld [vmem:[#allocation2 + $0x8] sm:$0xff]
      %102 = vst [vmem:[#allocation8] sm:$0xff] %v100
      %103 = vst [vmem:[#allocation8 + $0x8] sm:$0xff] %v101
    $region25: #{tpu_custom_call.1} parent=1 // pred_fallthru
      _
    // Predicated region
    $region26: #{tpu_custom_call.1} parent=1 // pred_check
      _
    $region27: #{tpu_custom_call.1} parent=1 // pred_check_branch
      %105 = sbr.rel (0) target = $region29
    $region28: #{tpu_custom_call.1} parent=1 // pred_region
      %107 = vsyncadd [#allocation5], 0
      %s108 = sshll.u32 [#allocation8], 4
      %s109 = int_to_ptr.vmem [resolvable:$true] %s108
      %s110 = sshll.u32 %s2, 4
      %s111 = int_to_ptr.hbm [resolvable:$true] %s110
      %116 = dma.vmem_to_hbm [thread:$0]  %s109, 256, %s111, [#allocation5], 128, 128, 8
    $region29: #{tpu_custom_call.1} parent=1 // pred_fallthru
      _
    // Predicated region
    $region30: #{tpu_custom_call.1} parent=1 // pred_check
      _
    $region31: #{tpu_custom_call.1} parent=1 // pred_check_branch
      %118 = sbr.rel (0) target = $region33
    $region32: #{tpu_custom_call.1} parent=1 // pred_region
      %120 = dma.done [#allocation5], 256
    $region33: #{tpu_custom_call.1} parent=1 // pred_fallthru
      _
    %121 = vsyncpa [#allocation4], 1
    %122 = vsyncpa [#allocation7], 1
    %123 = vsyncpa [#allocation5], 1

</llo_original>
